<compile_context>
chip_gen: v7x
topology: tpu7x:2x2x1
jax: 0.10.0
libtpu: 0.0.40
codegen_flags: <defaults>
</compile_context>

<pallas_src>
import functools

import jax
import jax.numpy as jnp
from jax import lax
from jax.experimental import pallas as pl
from jax.experimental.pallas import tpu as pltpu


def _silu(x):
    return x * jax.nn.sigmoid(x)


def _make_kernel(use_add):
    """Kernel for one batch element, lane-dense layout (H, W*C)."""

    def kernel(x_ref, w1_ref, s1_ref, b1_ref, smat_ref, w2_ref, s2_ref, b2_ref,
               o_ref):
        x = x_ref[...]                                       # (H, W*C_in)

        # ---- conv1: 1x1 conv == one block-diagonal matmul over the lane dim ----
        y1 = jnp.dot(x, w1_ref[...], preferred_element_type=jnp.float32)
        y1 = _silu(y1 * s1_ref[...] + b1_ref[...])           # (H, W*C_hid)

        # ---- conv2: 3x3 conv as ONE im2col matmul ----------------------------
        # dy = -1 / +1 taps (with zero padding in y) via (H,H) shift matrices;
        # dx taps + zero padding in x are folded into the banded weight w2.
        y1_m1 = jnp.dot(smat_ref[0], y1,
                        preferred_element_type=jnp.float32)  # row h -> y1[h-1]
        y1_p1 = jnp.dot(smat_ref[1], y1,
                        preferred_element_type=jnp.float32)  # row h -> y1[h+1]
        taps = jnp.concatenate([y1_m1, y1, y1_p1], axis=-1)  # (H, 3*W*C_hid)

        y2 = jnp.dot(taps, w2_ref[...],
                     preferred_element_type=jnp.float32)     # (H, W*C_out)
        y2 = _silu(y2 * s2_ref[...] + b2_ref[...])

        if use_add:                                          # residual shortcut
            y2 = y2 + x

        o_ref[...] = y2                                      # lane-dense store

    return kernel


@functools.partial(jax.jit, static_argnames=("use_add",))
def bottleneck_pallas(x_slab, w1_big, s1_t, b1_t, smat, w2_big, s2_t, b2_t, *,
                      use_add):
    """x_slab: (N, H, W*C_in) f32 lane-dense input.
    w1_big: (W*C_in, W*C_hid) block-diagonal 1x1 weight.
    smat:   (2, H, H) dy shift matrices.
    w2_big: (3*W*C_hid, W*C_out) banded im2col 3x3 weight.
    s*/b*:  (1, W*C) folded BatchNorm scale/bias tiled over W."""
    N, H, WCin = x_slab.shape
    WChid = w1_big.shape[1]
    WCout = w2_big.shape[1]

    kernel = _make_kernel(use_add)

    return pl.pallas_call(
        kernel,
        out_shape=jax.ShapeDtypeStruct((N, H, WCout), jnp.float32),
        grid=(N,),
        in_specs=[
            pl.BlockSpec((None, H, WCin), lambda n: (n, 0, 0)),
            pl.BlockSpec((WCin, WChid), lambda n: (0, 0)),
            pl.BlockSpec((1, WChid), lambda n: (0, 0)),
            pl.BlockSpec((1, WChid), lambda n: (0, 0)),
            pl.BlockSpec((2, H, H), lambda n: (0, 0, 0)),
            pl.BlockSpec((3 * WChid, WCout), lambda n: (0, 0)),
            pl.BlockSpec((1, WCout), lambda n: (0, 0)),
            pl.BlockSpec((1, WCout), lambda n: (0, 0)),
        ],
        out_specs=pl.BlockSpec((None, H, WCout), lambda n: (n, 0, 0)),
        compiler_params=pltpu.CompilerParams(
            dimension_semantics=("parallel",)),
    )(x_slab, w1_big, s1_t, b1_t, smat, w2_big, s2_t, b2_t)


def _fold_bn(gamma, beta, mean, var, eps=1e-3):
    scale = gamma / jnp.sqrt(var + eps)
    bias = beta - mean * scale
    return scale, bias


def _prep_params(w1_oihw, w2_oihw, s1, b1, s2, b2, H, W):
    """Wrapper glue: fold PyTorch-layout weights / BN params into the lane-dense
    block matrices consumed by the kernel (all precomputed once, outside)."""
    C_hid, C_in = w1_oihw.shape[0], w1_oihw.shape[1]
    C_out = w2_oihw.shape[0]

    # 1x1: OIHW (C_hid,C_in,1,1) -> (C_in,C_hid) -> block-diag (W*C_in, W*C_hid)
    w1 = jnp.transpose(w1_oihw.reshape(C_hid, C_in), (1, 0))
    w1_big = jnp.kron(jnp.eye(W, dtype=jnp.float32), w1)

    # 3x3: OIHW -> HWIO (3,3,C_hid,C_out); fold dx taps + x zero-padding into a
    # banded (W*C_hid, W*C_out) block per ky, then stack the 3 ky blocks along K.
    w2_hwio = jnp.transpose(w2_oihw, (2, 3, 1, 0))
    blocks = []
    for ky in range(3):
        blk = jnp.zeros((W * C_hid, W * C_out), jnp.float32)
        for kx in range(3):
            shift = jnp.eye(W, k=-(kx - 1), dtype=jnp.float32)  # w_in = w_out + kx - 1
            blk = blk + jnp.kron(shift, w2_hwio[ky, kx])
        blocks.append(blk)
    w2_big = jnp.concatenate(blocks, axis=0)          # (3*W*C_hid, W*C_out)

    # BN scale/bias tiled w-major / channel-minor to match the lane layout.
    s1_t = jnp.tile(s1, W).reshape(1, W * C_hid)
    b1_t = jnp.tile(b1, W).reshape(1, W * C_hid)
    s2_t = jnp.tile(s2, W).reshape(1, W * C_out)
    b2_t = jnp.tile(b2, W).reshape(1, W * C_out)

    # dy shift matrices (rows at the image border are all-zero => zero padding).
    smat = jnp.stack([jnp.eye(H, k=-1, dtype=jnp.float32),   # row h -> h-1
                      jnp.eye(H, k=1, dtype=jnp.float32)])   # row h -> h+1
    return w1_big, s1_t, b1_t, smat, w2_big, s2_t, b2_t


def _reference(x_nhwc, w1_hwio, s1, b1, w2_hwio, s2, b2, use_add):
    """Pure-JAX NHWC reference (same math as the PyTorch module in eval mode)."""
    y = lax.conv_general_dilated(
        x_nhwc, w1_hwio, (1, 1), "SAME",
        dimension_numbers=("NHWC", "HWIO", "NHWC"))
    y = _silu(y * s1 + b1)
    y = lax.conv_general_dilated(
        y, w2_hwio, (1, 1), "SAME",
        dimension_numbers=("NHWC", "HWIO", "NHWC"))
    y = _silu(y * s2 + b2)
    if use_add:
        y = y + x_nhwc
    return y


if __name__ == "__main__":
    # Module config: Bottleneck(in_channels=8, out_channels=8, shortcut=True,
    #                           expansion=0.5, act='silu')  -> hidden = 4
    N, C_in, H, W = 2, 8, 16, 16
    C_out = 8
    C_hid = int(C_out * 0.5)
    use_add = True and (C_in == C_out)

    key = jax.random.PRNGKey(0)
    keys = jax.random.split(key, 11)

    # Input in PyTorch NCHW convention; glue to lane-dense (N, H, W*C_in).
    x_nchw = jax.random.normal(keys[0], (N, C_in, H, W), jnp.float32)
    x_nhwc = jnp.transpose(x_nchw, (0, 2, 3, 1))
    x_slab = x_nhwc.reshape(N, H, W * C_in)          # last dim = 128 (lane-dense)

    # Deterministic synthetic parameters (PyTorch OIHW weight layouts).
    w1_oihw = 0.3 * jax.random.normal(keys[1], (C_hid, C_in, 1, 1), jnp.float32)
    w2_oihw = 0.2 * jax.random.normal(keys[2], (C_out, C_hid, 3, 3), jnp.float32)

    g1 = 1.0 + 0.1 * jax.random.normal(keys[3], (C_hid,), jnp.float32)
    be1 = 0.1 * jax.random.normal(keys[4], (C_hid,), jnp.float32)
    m1 = 0.1 * jax.random.normal(keys[5], (C_hid,), jnp.float32)
    v1 = jnp.abs(jax.random.normal(keys[6], (C_hid,), jnp.float32)) + 0.5

    g2 = 1.0 + 0.1 * jax.random.normal(keys[7], (C_out,), jnp.float32)
    be2 = 0.1 * jax.random.normal(keys[8], (C_out,), jnp.float32)
    m2 = 0.1 * jax.random.normal(keys[9], (C_out,), jnp.float32)
    v2 = jnp.abs(jax.random.normal(keys[10], (C_out,), jnp.float32)) + 0.5

    # Fold BatchNorm (eval mode, running stats) into scale/bias.
    s1, b1 = _fold_bn(g1, be1, m1, v1)
    s2, b2 = _fold_bn(g2, be2, m2, v2)

    params = _prep_params(w1_oihw, w2_oihw, s1, b1, s2, b2, H, W)

    out_slab = bottleneck_pallas(x_slab, *params, use_add=use_add)
    out_slab = jax.block_until_ready(out_slab)
    out_nhwc = out_slab.reshape(N, H, W, C_out)

    # Reference.
    w1_hwio = jnp.transpose(w1_oihw, (2, 3, 1, 0))   # (1,1,C_in,C_hid)
    w2_hwio = jnp.transpose(w2_oihw, (2, 3, 1, 0))   # (3,3,C_hid,C_out)
    ref = _reference(x_nhwc, w1_hwio, s1, b1, w2_hwio, s2, b2, use_add)
    ref = jax.block_until_ready(ref)

    assert out_nhwc.shape == (N, H, W, C_out), out_nhwc.shape
    assert jnp.allclose(out_nhwc, ref, atol=2e-3, rtol=2e-3), (
        float(jnp.max(jnp.abs(out_nhwc - ref))))

    print("KERNEL_OK")
</pallas_src>

<mosaic_0001>
module attributes {stable_mosaic.version = 11 : i64} {
  func.func @kernel(%arg0: i32, %arg1: memref<1x16x128xf32, #tpu.memory_space<vmem>>, %arg2: memref<128x64xf32, #tpu.memory_space<vmem>>, %arg3: memref<1x64xf32, #tpu.memory_space<vmem>>, %arg4: memref<1x64xf32, #tpu.memory_space<vmem>>, %arg5: memref<2x16x16xf32, #tpu.memory_space<vmem>>, %arg6: memref<192x128xf32, #tpu.memory_space<vmem>>, %arg7: memref<1x128xf32, #tpu.memory_space<vmem>>, %arg8: memref<1x128xf32, #tpu.memory_space<vmem>>, %arg9: memref<1x16x128xf32, #tpu.memory_space<vmem>>) attributes {dimension_semantics = [#tpu.dimension_semantics<parallel>], iteration_bounds = array<i64: 2>, scalar_prefetch = 0 : i64, scratch_operands = 0 : i64, tpu.core_type = #tpu.core_type<tc>, window_params = [{transform_indices = @transform_0, window_bounds = array<i64: 1, 16, 128>}, {pipeline_mode = #tpu.pipeline_mode<synchronous>, transform_indices = @transform_1, window_bounds = array<i64: 128, 64>}, {pipeline_mode = #tpu.pipeline_mode<synchronous>, transform_indices = @transform_2, window_bounds = array<i64: 1, 64>}, {pipeline_mode = #tpu.pipeline_mode<synchronous>, transform_indices = @transform_3, window_bounds = array<i64: 1, 64>}, {pipeline_mode = #tpu.pipeline_mode<synchronous>, transform_indices = @transform_4, window_bounds = array<i64: 2, 16, 16>}, {pipeline_mode = #tpu.pipeline_mode<synchronous>, transform_indices = @transform_5, window_bounds = array<i64: 192, 128>}, {pipeline_mode = #tpu.pipeline_mode<synchronous>, transform_indices = @transform_6, window_bounds = array<i64: 1, 128>}, {pipeline_mode = #tpu.pipeline_mode<synchronous>, transform_indices = @transform_7, window_bounds = array<i64: 1, 128>}, {transform_indices = @transform_8, window_bounds = array<i64: 1, 16, 128>}]} {
    %c0 = arith.constant 0 : index
    %c0_0 = arith.constant 0 : index
    %c0_1 = arith.constant 0 : index
    %0 = vector.load %arg1[%c0, %c0_0, %c0_1] : memref<1x16x128xf32, #tpu.memory_space<vmem>>, vector<1x16x128xf32>
    %1 = vector.shape_cast %0 : vector<1x16x128xf32> to vector<16x128xf32>
    %c0_2 = arith.constant 0 : index
    %c0_3 = arith.constant 0 : index
    %2 = vector.load %arg2[%c0_2, %c0_3] : memref<128x64xf32, #tpu.memory_space<vmem>>, vector<128x64xf32>
    %cst = arith.constant dense<0.000000e+00> : vector<16x64xf32>
    %3 = tpu.matmul %1, %2, %cst {dimension_numbers = #tpu.dot_dimension_numbers<[1], [0], [0], [1], [0, 0, 1, 1], [], []>} : vector<16x128xf32>, vector<128x64xf32>, vector<16x64xf32> -> vector<16x64xf32>
    %c0_4 = arith.constant 0 : index
    %c0_5 = arith.constant 0 : index
    %4 = vector.load %arg3[%c0_4, %c0_5] : memref<1x64xf32, #tpu.memory_space<vmem>>, vector<1x64xf32>
    %5 = vector.broadcast %4 : vector<1x64xf32> to vector<16x64xf32>
    %6 = arith.mulf %3, %5 : vector<16x64xf32>
    %c0_6 = arith.constant 0 : index
    %c0_7 = arith.constant 0 : index
    %7 = vector.load %arg4[%c0_6, %c0_7] : memref<1x64xf32, #tpu.memory_space<vmem>>, vector<1x64xf32>
    %8 = vector.broadcast %7 : vector<1x64xf32> to vector<16x64xf32>
    %9 = arith.addf %6, %8 : vector<16x64xf32>
    %10 = arith.negf %9 : vector<16x64xf32>
    %11 = math.exp %10 : vector<16x64xf32>
    %cst_8 = arith.constant 1.000000e+00 : f32
    %12 = vector.broadcast %cst_8 : f32 to vector<16x64xf32>
    %13 = arith.addf %12, %11 : vector<16x64xf32>
    %14 = arith.divf %12, %13 : vector<16x64xf32>
    %15 = arith.mulf %9, %14 : vector<16x64xf32>
    %c0_9 = arith.constant 0 : index
    %c0_10 = arith.constant 0 : index
    %c0_11 = arith.constant 0 : index
    %16 = vector.load %arg5[%c0_9, %c0_10, %c0_11] : memref<2x16x16xf32, #tpu.memory_space<vmem>>, vector<1x16x16xf32>
    %17 = vector.shape_cast %16 : vector<1x16x16xf32> to vector<16x16xf32>
    %cst_12 = arith.constant dense<0.000000e+00> : vector<16x64xf32>
    %18 = tpu.matmul %17, %15, %cst_12 {dimension_numbers = #tpu.dot_dimension_numbers<[1], [0], [0], [1], [0, 0, 1, 1], [], []>} : vector<16x16xf32>, vector<16x64xf32>, vector<16x64xf32> -> vector<16x64xf32>
    %c1 = arith.constant 1 : index
    %c0_13 = arith.constant 0 : index
    %c0_14 = arith.constant 0 : index
    %19 = vector.load %arg5[%c1, %c0_13, %c0_14] : memref<2x16x16xf32, #tpu.memory_space<vmem>>, vector<1x16x16xf32>
    %20 = vector.shape_cast %19 : vector<1x16x16xf32> to vector<16x16xf32>
    %cst_15 = arith.constant dense<0.000000e+00> : vector<16x64xf32>
    %21 = tpu.matmul %20, %15, %cst_15 {dimension_numbers = #tpu.dot_dimension_numbers<[1], [0], [0], [1], [0, 0, 1, 1], [], []>} : vector<16x16xf32>, vector<16x64xf32>, vector<16x64xf32> -> vector<16x64xf32>
    %22 = tpu.concatenate %18, %15, %21 in 1 : vector<16x64xf32>, vector<16x64xf32>, vector<16x64xf32> -> vector<16x192xf32>
    %c0_16 = arith.constant 0 : index
    %c0_17 = arith.constant 0 : index
    %23 = vector.load %arg6[%c0_16, %c0_17] : memref<192x128xf32, #tpu.memory_space<vmem>>, vector<192x128xf32>
    %cst_18 = arith.constant dense<0.000000e+00> : vector<16x128xf32>
    %24 = tpu.matmul %22, %23, %cst_18 {dimension_numbers = #tpu.dot_dimension_numbers<[1], [0], [0], [1], [0, 0, 1, 1], [], []>} : vector<16x192xf32>, vector<192x128xf32>, vector<16x128xf32> -> vector<16x128xf32>
    %c0_19 = arith.constant 0 : index
    %c0_20 = arith.constant 0 : index
    %25 = vector.load %arg7[%c0_19, %c0_20] : memref<1x128xf32, #tpu.memory_space<vmem>>, vector<1x128xf32>
    %26 = vector.broadcast %25 : vector<1x128xf32> to vector<16x128xf32>
    %27 = arith.mulf %24, %26 : vector<16x128xf32>
    %c0_21 = arith.constant 0 : index
    %c0_22 = arith.constant 0 : index
    %28 = vector.load %arg8[%c0_21, %c0_22] : memref<1x128xf32, #tpu.memory_space<vmem>>, vector<1x128xf32>
    %29 = vector.broadcast %28 : vector<1x128xf32> to vector<16x128xf32>
    %30 = arith.addf %27, %29 : vector<16x128xf32>
    %31 = arith.negf %30 : vector<16x128xf32>
    %32 = math.exp %31 : vector<16x128xf32>
    %cst_23 = arith.constant 1.000000e+00 : f32
    %33 = vector.broadcast %cst_23 : f32 to vector<16x128xf32>
    %34 = arith.addf %33, %32 : vector<16x128xf32>
    %35 = arith.divf %33, %34 : vector<16x128xf32>
    %36 = arith.mulf %30, %35 : vector<16x128xf32>
    %37 = arith.addf %36, %1 : vector<16x128xf32>
    %c0_24 = arith.constant 0 : index
    %c0_25 = arith.constant 0 : index
    %c0_26 = arith.constant 0 : index
    %38 = vector.load %arg9[%c0_24, %c0_25, %c0_26] : memref<1x16x128xf32, #tpu.memory_space<vmem>>, vector<1x16x128xf32>
    %39 = vector.shape_cast %38 : vector<1x16x128xf32> to vector<16x128xf32>
    %40 = vector.shape_cast %37 : vector<16x128xf32> to vector<1x16x128xf32>
    tpu.vector_store %arg9[%c0_24, %c0_25, %c0_26], %40 {strides = array<i32>} : memref<1x16x128xf32, #tpu.memory_space<vmem>>, vector<1x16x128xf32>,
    return
  }
  func.func @transform_0(%arg0: i32) -> (i32, i32, i32) {
    %c0_i32 = arith.constant 0 : i32
    %c0_i32_0 = arith.constant 0 : i32
    %c0_i32_1 = arith.constant 0 : i32
    return %arg0, %c0_i32, %c0_i32_0 : i32, i32, i32
  }
  func.func @transform_1(%arg0: i32) -> (i32, i32) {
    %c0_i32 = arith.constant 0 : i32
    %c0_i32_0 = arith.constant 0 : i32
    %c0_i32_1 = arith.constant 0 : i32
    return %c0_i32, %c0_i32_0 : i32, i32
  }
  func.func @transform_2(%arg0: i32) -> (i32, i32) {
    %c0_i32 = arith.constant 0 : i32
    %c0_i32_0 = arith.constant 0 : i32
    %c0_i32_1 = arith.constant 0 : i32
    return %c0_i32, %c0_i32_0 : i32, i32
  }
  func.func @transform_3(%arg0: i32) -> (i32, i32) {
    %c0_i32 = arith.constant 0 : i32
    %c0_i32_0 = arith.constant 0 : i32
    %c0_i32_1 = arith.constant 0 : i32
    return %c0_i32, %c0_i32_0 : i32, i32
  }
  func.func @transform_4(%arg0: i32) -> (i32, i32, i32) {
    %c0_i32 = arith.constant 0 : i32
    %c0_i32_0 = arith.constant 0 : i32
    %c0_i32_1 = arith.constant 0 : i32
    %c0_i32_2 = arith.constant 0 : i32
    return %c0_i32, %c0_i32_0, %c0_i32_1 : i32, i32, i32
  }
  func.func @transform_5(%arg0: i32) -> (i32, i32) {
    %c0_i32 = arith.constant 0 : i32
    %c0_i32_0 = arith.constant 0 : i32
    %c0_i32_1 = arith.constant 0 : i32
    return %c0_i32, %c0_i32_0 : i32, i32
  }
  func.func @transform_6(%arg0: i32) -> (i32, i32) {
    %c0_i32 = arith.constant 0 : i32
    %c0_i32_0 = arith.constant 0 : i32
    %c0_i32_1 = arith.constant 0 : i32
    return %c0_i32, %c0_i32_0 : i32, i32
  }
  func.func @transform_7(%arg0: i32) -> (i32, i32) {
    %c0_i32 = arith.constant 0 : i32
    %c0_i32_0 = arith.constant 0 : i32
    %c0_i32_1 = arith.constant 0 : i32
    return %c0_i32, %c0_i32_0 : i32, i32
  }
  func.func @transform_8(%arg0: i32) -> (i32, i32, i32) {
    %c0_i32 = arith.constant 0 : i32
    %c0_i32_0 = arith.constant 0 : i32
    %c0_i32_1 = arith.constant 0 : i32
    return %arg0, %c0_i32, %c0_i32_0 : i32, i32, i32
  }
}

</mosaic_0001>

<llo_original>
// kernel: bottleneck_pallas.1
$region0: #{bottleneck_pallas.1}
  #allocation0 [shape = 'u32[]', space=smem, size = 0x4, offset = 0x4, fixed_abs, tag = 'smem constant byte address 0x4 - core index']
  #allocation1 [shape = 'u32[144,128]{1,0:T(1,128)}', space=vmem, size = 0x12000, scoped, tag = 'internal scratch']
  %s0 = inlined_call_operand.hbm [shape: f32[2,16,128], index: 0, kind: input, shape index: {}]
  %s1 = inlined_call_operand.vmem [shape: f32[128,64], index: 1, kind: input, shape index: {}]
  %s2 = inlined_call_operand.vmem [shape: f32[1,64], index: 2, kind: input, shape index: {}]
  %s3 = inlined_call_operand.vmem [shape: f32[1,64], index: 3, kind: input, shape index: {}]
  %s4 = inlined_call_operand.hbm [shape: f32[2,16,16], index: 4, kind: input, shape index: {}]
  %s5 = inlined_call_operand.vmem [shape: f32[192,128], index: 5, kind: input, shape index: {}]
  %s6 = inlined_call_operand.vmem [shape: f32[1,128], index: 6, kind: input, shape index: {}]
  %s7 = inlined_call_operand.vmem [shape: f32[1,128], index: 7, kind: input, shape index: {}]
  %s8 = inlined_call_operand.hbm [shape: f32[2,16,128], index: 8, kind: output, shape index: {}]
  %s9 = sld [smem:[#allocation0]]
  $region73: #{bottleneck_pallas.1} parent=0
    _
  %s11 = ssub.s32 1, %s9
  %s12 = scalar_select 0, %s11, %s9
  $region1: #{bottleneck_pallas.1} parent=0
    #allocation2 [shape = 'u8[16384]{0}', space=vmem, size = 0x4000, scoped, tag = 'input window, operand 0']
    #allocation3 [shape = 's32[2]{0}', space=sflag, size = 0x8, scoped, tag = 'scoped memory for bottleneck_pallas.1']
    #allocation4 [shape = 's32[2]{0}', space=sflag, size = 0x8, scoped, tag = 'scoped memory for bottleneck_pallas.1']
    #allocation5 [shape = 'u8[16384]{0}', space=vmem, size = 0x4000, scoped, tag = 'input window, operand 4, single buffered']
    #allocation6 [shape = 's32[1]{0}', space=sflag, size = 0x4, scoped, tag = 'scoped memory for bottleneck_pallas.1']
    #allocation7 [shape = 'u8[16384]{0}', space=vmem, size = 0x4000, scoped, tag = 'output window, operand 0']
    %13 = vsyncpa [#allocation3], 0
    %s14 = scalar_lea.sflag [#allocation3], 1
    %15 = vsyncpa %s14, 0
    %16 = vsyncpa [#allocation6], 0
    %17 = vsyncpa [#allocation4], 0
    %s18 = scalar_lea.sflag [#allocation4], 1
    %19 = vsyncpa %s18, 0
    loop: start=0, step=1, limit=4
    $region2: #{bottleneck_pallas.1} parent=1 // loop_pre_header
      _
    $region3: #{bottleneck_pallas.1} parent=1 // loop_header
      %s21 = sphi 0, %s25
      %p22 = scmp.ge.s32.totalorder %s21, 4
      %s31 = sphi 0, %s33
      %s34 = sphi 0, %s31
      %s35 = sphi 0, %s34
      %s51 = sphi 0, %s35
      %s55 = sphi 0, %s55
      %s57 = sphi 0, %s55
      %s58 = sphi 0, %s57
      %s72 = sphi 0, %s58
      %s76 = sphi 0, %s76
      %s78 = sphi 0, %s76
      %s79 = sphi 0, %s78
      %s93 = sphi 0, %s79
      %s97 = sphi 0, %s97
      %s99 = sphi 0, %s97
      %s100 = sphi 0, %s99
      %s114 = sphi 0, %s100
      %s118 = sphi 0, %s118
      %s120 = sphi 0, %s118
      %s121 = sphi 0, %s120
      %s135 = sphi 0, %s121
      %s139 = sphi 0, %s139
      %s141 = sphi 0, %s139
      %s142 = sphi 0, %s141
      %s156 = sphi 0, %s142
      %s160 = sphi 0, %s160
      %s162 = sphi 0, %s160
      %s163 = sphi 0, %s162
      %s177 = sphi 0, %s163
      %s181 = sphi 0, %s181
      %s183 = sphi 0, %s181
      %s184 = sphi 0, %s183
      %s198 = sphi 0, %s184
      %s204 = sphi 0, %s206
      %s207 = sphi 0, %s204
      %s208 = sphi 0, %s207
      %s224 = sphi 0, %s208
    $region4: #{bottleneck_pallas.1} parent=1 // loop_header_branch
      %24 = sbr.rel (%p22) target = $region8
    $region5: #{bottleneck_pallas.1} parent=1 // loop_body
      %s26 = ssub.s32 %s21, 1
      %s27 = ssub.s32 %s21, 2
      %s28 = sadd.s32 %s21, 1
      %s29 = ssub.s32 %s21, %s28
      %p30 = scmp.eq.s32.totalorder %s29, 0
      %s32 = sadd.s32 %s31, 1
      %s33 = scalar_select %p30, %s31, %s32
      %p36 = pneg %p30
      %p37 = scmp.eq.s32.totalorder %s21, 1
      %p38 = por %p36, %p37
      %p39 = scmp.ne.s32.totalorder %s31, %s34
      %p40 = scmp.eq.s32.totalorder %s21, 0
      %p41 = por %p39, %p40
      %p42 = scmp.ne.s32.totalorder %s31, %s34
      %p43 = scmp.eq.s32.totalorder %s26, 1
      %p44 = por %p42, %p43
      %p45 = scmp.ne.s32.totalorder %s34, %s35
      %p46 = scmp.eq.s32.totalorder %s26, 0
      %p47 = por %p45, %p46
      %p48 = scmp.ne.s32.totalorder %s34, %s35
      %p49 = scmp.eq.s32.totalorder %s27, 1
      %p50 = por %p48, %p49
      %p52 = scmp.ne.s32.totalorder %s35, %s51
      %p53 = scmp.eq.s32.totalorder %s27, 0
      %p54 = por %p52, %p53
      %s56 = sadd.s32 %s55, 1
      %p59 = scmp.eq.s32.totalorder %s21, 1
      %p60 = scmp.ne.s32.totalorder %s55, %s57
      %p61 = scmp.eq.s32.totalorder %s21, 0
      %p62 = por %p60, %p61
      %p63 = scmp.ne.s32.totalorder %s55, %s57
      %p64 = scmp.eq.s32.totalorder %s26, 1
      %p65 = por %p63, %p64
      %p66 = scmp.ne.s32.totalorder %s57, %s58
      %p67 = scmp.eq.s32.totalorder %s26, 0
      %p68 = por %p66, %p67
      %p69 = scmp.ne.s32.totalorder %s57, %s58
      %p70 = scmp.eq.s32.totalorder %s27, 1
      %p71 = por %p69, %p70
      %p73 = scmp.ne.s32.totalorder %s58, %s72
      %p74 = scmp.eq.s32.totalorder %s27, 0
      %p75 = por %p73, %p74
      %s77 = sadd.s32 %s76, 1
      %p80 = scmp.eq.s32.totalorder %s21, 1
      %p81 = scmp.ne.s32.totalorder %s76, %s78
      %p82 = scmp.eq.s32.totalorder %s21, 0
      %p83 = por %p81, %p82
      %p84 = scmp.ne.s32.totalorder %s76, %s78
      %p85 = scmp.eq.s32.totalorder %s26, 1
      %p86 = por %p84, %p85
      %p87 = scmp.ne.s32.totalorder %s78, %s79
      %p88 = scmp.eq.s32.totalorder %s26, 0
      %p89 = por %p87, %p88
      %p90 = scmp.ne.s32.totalorder %s78, %s79
      %p91 = scmp.eq.s32.totalorder %s27, 1
      %p92 = por %p90, %p91
      %p94 = scmp.ne.s32.totalorder %s79, %s93
      %p95 = scmp.eq.s32.totalorder %s27, 0
      %p96 = por %p94, %p95
      %s98 = sadd.s32 %s97, 1
      %p101 = scmp.eq.s32.totalorder %s21, 1
      %p102 = scmp.ne.s32.totalorder %s97, %s99
      %p103 = scmp.eq.s32.totalorder %s21, 0
      %p104 = por %p102, %p103
      %p105 = scmp.ne.s32.totalorder %s97, %s99
      %p106 = scmp.eq.s32.totalorder %s26, 1
      %p107 = por %p105, %p106
      %p108 = scmp.ne.s32.totalorder %s99, %s100
      %p109 = scmp.eq.s32.totalorder %s26, 0
      %p110 = por %p108, %p109
      %p111 = scmp.ne.s32.totalorder %s99, %s100
      %p112 = scmp.eq.s32.totalorder %s27, 1
      %p113 = por %p111, %p112
      %p115 = scmp.ne.s32.totalorder %s100, %s114
      %p116 = scmp.eq.s32.totalorder %s27, 0
      %p117 = por %p115, %p116
      %s119 = sadd.s32 %s118, 1
      %p122 = scmp.eq.s32.totalorder %s21, 1
      %p123 = scmp.ne.s32.totalorder %s118, %s120
      %p124 = scmp.eq.s32.totalorder %s21, 0
      %p125 = por %p123, %p124
      %p126 = scmp.ne.s32.totalorder %s118, %s120
      %p127 = scmp.eq.s32.totalorder %s26, 1
      %p128 = por %p126, %p127
      %p129 = scmp.ne.s32.totalorder %s120, %s121
      %p130 = scmp.eq.s32.totalorder %s26, 0
      %p131 = por %p129, %p130
      %p132 = scmp.ne.s32.totalorder %s120, %s121
      %p133 = scmp.eq.s32.totalorder %s27, 1
      %p134 = por %p132, %p133
      %p136 = scmp.ne.s32.totalorder %s121, %s135
      %p137 = scmp.eq.s32.totalorder %s27, 0
      %p138 = por %p136, %p137
      %s140 = sadd.s32 %s139, 1
      %p143 = scmp.eq.s32.totalorder %s21, 1
      %p144 = scmp.ne.s32.totalorder %s139, %s141
      %p145 = scmp.eq.s32.totalorder %s21, 0
      %p146 = por %p144, %p145
      %p147 = scmp.ne.s32.totalorder %s139, %s141
      %p148 = scmp.eq.s32.totalorder %s26, 1
      %p149 = por %p147, %p148
      %p150 = scmp.ne.s32.totalorder %s141, %s142
      %p151 = scmp.eq.s32.totalorder %s26, 0
      %p152 = por %p150, %p151
      %p153 = scmp.ne.s32.totalorder %s141, %s142
      %p154 = scmp.eq.s32.totalorder %s27, 1
      %p155 = por %p153, %p154
      %p157 = scmp.ne.s32.totalorder %s142, %s156
      %p158 = scmp.eq.s32.totalorder %s27, 0
      %p159 = por %p157, %p158
      %s161 = sadd.s32 %s160, 1
      %p164 = scmp.eq.s32.totalorder %s21, 1
      %p165 = scmp.ne.s32.totalorder %s160, %s162
      %p166 = scmp.eq.s32.totalorder %s21, 0
      %p167 = por %p165, %p166
      %p168 = scmp.ne.s32.totalorder %s160, %s162
      %p169 = scmp.eq.s32.totalorder %s26, 1
      %p170 = por %p168, %p169
      %p171 = scmp.ne.s32.totalorder %s162, %s163
      %p172 = scmp.eq.s32.totalorder %s26, 0
      %p173 = por %p171, %p172
      %p174 = scmp.ne.s32.totalorder %s162, %s163
      %p175 = scmp.eq.s32.totalorder %s27, 1
      %p176 = por %p174, %p175
      %p178 = scmp.ne.s32.totalorder %s163, %s177
      %p179 = scmp.eq.s32.totalorder %s27, 0
      %p180 = por %p178, %p179
      %s182 = sadd.s32 %s181, 1
      %p185 = scmp.eq.s32.totalorder %s21, 1
      %p186 = scmp.ne.s32.totalorder %s181, %s183
      %p187 = scmp.eq.s32.totalorder %s21, 0
      %p188 = por %p186, %p187
      %p189 = scmp.ne.s32.totalorder %s181, %s183
      %p190 = scmp.eq.s32.totalorder %s26, 1
      %p191 = por %p189, %p190
      %p192 = scmp.ne.s32.totalorder %s183, %s184
      %p193 = scmp.eq.s32.totalorder %s26, 0
      %p194 = por %p192, %p193
      %p195 = scmp.ne.s32.totalorder %s183, %s184
      %p196 = scmp.eq.s32.totalorder %s27, 1
      %p197 = por %p195, %p196
      %p199 = scmp.ne.s32.totalorder %s184, %s198
      %p200 = scmp.eq.s32.totalorder %s27, 0
      %p201 = por %p199, %p200
      %s202 = ssub.s32 %s21, %s28
      %p203 = scmp.eq.s32.totalorder %s202, 0
      %s205 = sadd.s32 %s204, 1
      %s206 = scalar_select %p203, %s204, %s205
      %p209 = pneg %p203
      %p210 = scmp.eq.s32.totalorder %s21, 1
      %p211 = por %p209, %p210
      %p212 = scmp.ne.s32.totalorder %s204, %s207
      %p213 = scmp.eq.s32.totalorder %s21, 0
      %p214 = por %p212, %p213
      %p215 = scmp.ne.s32.totalorder %s204, %s207
      %p216 = scmp.eq.s32.totalorder %s26, 1
      %p217 = por %p215, %p216
      %p218 = scmp.ne.s32.totalorder %s207, %s208
      %p219 = scmp.eq.s32.totalorder %s26, 0
      %p220 = por %p218, %p219
      %p221 = scmp.ne.s32.totalorder %s207, %s208
      %p222 = scmp.eq.s32.totalorder %s27, 1
      %p223 = por %p221, %p222
      %p225 = scmp.ne.s32.totalorder %s208, %s224
      %p226 = scmp.eq.s32.totalorder %s27, 0
      %p227 = por %p225, %p226
      %p228 = scmp.le.s32.totalorder 1, %s21
      %p229 = scmp.lt.s32.totalorder %s21, 3
      %p230 = pnand %p228, %p229
      %p231 = pneg %p230
      // Predicated region
      $region9: #{bottleneck_pallas.1} parent=5 // pred_check
        _
      $region10: #{bottleneck_pallas.1} parent=5 // pred_check_branch
        %233 = sbr.rel (%p230) target = $region12
      $region11: #{bottleneck_pallas.1} parent=5 // pred_region
        %s234 = ssub.s32 %s21, 1
        // Predicated region
        $region13: #{bottleneck_pallas.1} parent=11 // pred_check
          %p235 = pneg %p68
        $region14: #{bottleneck_pallas.1} parent=11 // pred_check_branch
          %237 = sbr.rel (%p235) target = $region16
        $region15: #{bottleneck_pallas.1} parent=11 // pred_region
          _
        $region16: #{bottleneck_pallas.1} parent=11 // pred_fallthru
          _
        // Predicated region
        $region17: #{bottleneck_pallas.1} parent=11 // pred_check
          %p238 = pneg %p89
        $region18: #{bottleneck_pallas.1} parent=11 // pred_check_branch
          %240 = sbr.rel (%p238) target = $region20
        $region19: #{bottleneck_pallas.1} parent=11 // pred_region
          _
        $region20: #{bottleneck_pallas.1} parent=11 // pred_fallthru
          _
        // Predicated region
        $region21: #{bottleneck_pallas.1} parent=11 // pred_check
          %p241 = pneg %p110
        $region22: #{bottleneck_pallas.1} parent=11 // pred_check_branch
          %243 = sbr.rel (%p241) target = $region24
        $region23: #{bottleneck_pallas.1} parent=11 // pred_region
          _
        $region24: #{bottleneck_pallas.1} parent=11 // pred_fallthru
          _
        // Predicated region
        $region25: #{bottleneck_pallas.1} parent=11 // pred_check
          %p244 = pneg %p131
        $region26: #{bottleneck_pallas.1} parent=11 // pred_check_branch
          %246 = sbr.rel (%p244) target = $region28
        $region27: #{bottleneck_pallas.1} parent=11 // pred_region
          %s248 = ssub.s32 512, 512
          %249 = vsyncadd [#allocation6], %s248
          %s250 = sshll.u32 [#allocation5], 4
          %s251 = int_to_ptr.vmem [resolvable:$true] %s250
          %256 = dma.hbm_to_vmem [thread:$0]  %s4, 512, %s251, [#allocation6], 128, 128, 8
        $region28: #{bottleneck_pallas.1} parent=11 // pred_fallthru
          _
        // Predicated region
        $region29: #{bottleneck_pallas.1} parent=11 // pred_check
          %p257 = pneg %p152
        $region30: #{bottleneck_pallas.1} parent=11 // pred_check_branch
          %259 = sbr.rel (%p257) target = $region32
        $region31: #{bottleneck_pallas.1} parent=11 // pred_region
          _
        $region32: #{bottleneck_pallas.1} parent=11 // pred_fallthru
          _
        // Predicated region
        $region33: #{bottleneck_pallas.1} parent=11 // pred_check
          %p260 = pneg %p173
        $region34: #{bottleneck_pallas.1} parent=11 // pred_check_branch
          %262 = sbr.rel (%p260) target = $region36
        $region35: #{bottleneck_pallas.1} parent=11 // pred_region
          _
        $region36: #{bottleneck_pallas.1} parent=11 // pred_fallthru
          _
        // Predicated region
        $region37: #{bottleneck_pallas.1} parent=11 // pred_check
          %p263 = pneg %p194
        $region38: #{bottleneck_pallas.1} parent=11 // pred_check_branch
          %265 = sbr.rel (%p263) target = $region40
        $region39: #{bottleneck_pallas.1} parent=11 // pred_region
          _
        $region40: #{bottleneck_pallas.1} parent=11 // pred_fallthru
          _
      $region12: #{bottleneck_pallas.1} parent=5 // pred_fallthru
        _
      %p266 = scmp.lt.s32.totalorder %s21, 2
      // Predicated region
      $region41: #{bottleneck_pallas.1} parent=5 // pred_check
        %p267 = pneg %p266
      $region42: #{bottleneck_pallas.1} parent=5 // pred_check_branch
        %269 = sbr.rel (%p267) target = $region44
      $region43: #{bottleneck_pallas.1} parent=5 // pred_region
        // Predicated region
        $region45: #{bottleneck_pallas.1} parent=43 // pred_check
          %p270 = pneg %p41
        $region46: #{bottleneck_pallas.1} parent=43 // pred_check_branch
          %272 = sbr.rel (%p270) target = $region48
        $region47: #{bottleneck_pallas.1} parent=43 // pred_region
          %s273 = sand.u32 %s31, 1
          %s274 = scalar_lea.sflag [#allocation3], %s273
          %s275 = sand.u32 %s31, 1
          %s276 = smul.addr %s275, 16
          %s277 = scalar_lea.vmem [#allocation2], %s276
          %s279 = ssub.s32 256, 256
          %280 = vsyncadd %s274, %s279
          %s281 = smul.addr %s21, 2
          %s282 = smul.addr %s281, 128
          %s283 = scalar_lea.hbm %s0, %s282
          %s284 = sshll.u32 %s277, 4
          %s285 = int_to_ptr.vmem [resolvable:$true] %s284
          %290 = dma.hbm_to_vmem [thread:$0]  %s283, 256, %s285, %s274, 128, 128, 8
        $region48: #{bottleneck_pallas.1} parent=43 // pred_fallthru
          _
      $region44: #{bottleneck_pallas.1} parent=5 // pred_fallthru
        _
      %p291 = scmp.le.s32.totalorder 1, %s21
      %p292 = scmp.lt.s32.totalorder %s21, 3
      %p293 = pnand %p291, %p292
      %p294 = pneg %p293
      // Predicated region
      $region49: #{bottleneck_pallas.1} parent=5 // pred_check
        _
      $region50: #{bottleneck_pallas.1} parent=5 // pred_check_branch
        %296 = sbr.rel (%p293) target = $region52
      $region51: #{bottleneck_pallas.1} parent=5 // pred_region
        %s297 = ssub.s32 %s21, 1
        %s298 = sand.u32 %s34, 1
        %s299 = scalar_lea.sflag [#allocation3], %s298
        %s300 = sand.u32 %s34, 1
        %s301 = smul.addr %s300, 16
        %s302 = scalar_lea.vmem [#allocation2], %s301
        // Predicated region
        $region53: #{bottleneck_pallas.1} parent=51 // pred_check
          %p303 = pneg %p47
        $region54: #{bottleneck_pallas.1} parent=51 // pred_check_branch
          %305 = sbr.rel (%p303) target = $region56
        $region55: #{bottleneck_pallas.1} parent=51 // pred_region
          %306 = dma.done %s299, 256
        $region56: #{bottleneck_pallas.1} parent=51 // pred_fallthru
          _
        // Predicated region
        $region57: #{bottleneck_pallas.1} parent=51 // pred_check
          %p307 = pneg %p131
        $region58: #{bottleneck_pallas.1} parent=51 // pred_check_branch
          %309 = sbr.rel (%p307) target = $region60
        $region59: #{bottleneck_pallas.1} parent=51 // pred_region
          %310 = dma.done [#allocation6], 512
        $region60: #{bottleneck_pallas.1} parent=51 // pred_fallthru
          _
        %s311 = sand.u32 %s34, 1
        %s312 = scalar_lea.sflag [#allocation3], %s311
        %s313 = sand.u32 %s34, 1
        %s314 = smul.addr %s313, 16
        %s315 = scalar_lea.vmem [#allocation2], %s314
        %p316 = pneg %p47
        %p317 = pneg %p44
        %p318 = pneg %p68
        %p319 = pneg %p65
        %p320 = pneg %p89
        %p321 = pneg %p86
        %p322 = pneg %p110
        %p323 = pneg %p107
        %p324 = pneg %p131
        %p325 = pneg %p128
        %p326 = pneg %p152
        %p327 = pneg %p149
        %p328 = pneg %p173
        %p329 = pneg %p170
        %p330 = pneg %p194
        %p331 = pneg %p191
        %p332 = pneg %p220
        %p333 = pneg %p217
        %s334 = sand.u32 %s207, 1
        %s335 = scalar_lea.sflag [#allocation4], %s334
        %s336 = sand.u32 %s207, 1
        %s337 = smul.addr %s336, 16
        %s338 = scalar_lea.vmem [#allocation7], %s337
        %v339 = vld [vmem:[%s302] sm:$0xff]
        %v340 = vld [vmem:[%s302 + $0x8] sm:$0xff]
        %v341 = vld [vmem:[%s1] sm:$0xff]
        %v342 = vld [vmem:[%s1 + $0x8] sm:$0xff]
        %v343 = vld [vmem:[%s1 + $0x10] sm:$0xff]
        %v344 = vld [vmem:[%s1 + $0x18] sm:$0xff]
        %v345 = vld [vmem:[%s1 + $0x20] sm:$0xff]
        %v346 = vld [vmem:[%s1 + $0x28] sm:$0xff]
        %v347 = vld [vmem:[%s1 + $0x30] sm:$0xff]
        %v348 = vld [vmem:[%s1 + $0x38] sm:$0xff]
        %v349 = vld [vmem:[%s1 + $0x40] sm:$0xff]
        %v350 = vld [vmem:[%s1 + $0x48] sm:$0xff]
        %v351 = vld [vmem:[%s1 + $0x50] sm:$0xff]
        %v352 = vld [vmem:[%s1 + $0x58] sm:$0xff]
        %v353 = vld [vmem:[%s1 + $0x60] sm:$0xff]
        %v354 = vld [vmem:[%s1 + $0x68] sm:$0xff]
        %v355 = vld [vmem:[%s1 + $0x70] sm:$0xff]
        %v356 = vld [vmem:[%s1 + $0x78] sm:$0xff]
        %357 = vmatprep.subr.mxu0 0.0
        %358 = vmatpush1.msra.mxu0 %v341
        %359 = vmatprep.subr.mxu0 0.0
        %360 = vmatpush1.msra.mxu0 %v342
        %361 = vmatprep.subr.mxu0 0.0
        %362 = vmatpush1.msra.mxu0 %v343
        %363 = vmatprep.subr.mxu0 0.0
        %364 = vmatpush1.msra.mxu0 %v344
        %365 = vmatprep.subr.mxu0 0.0
        %366 = vmatpush1.msra.mxu0 %v345
        %367 = vmatprep.subr.mxu0 0.0
        %368 = vmatpush1.msra.mxu0 %v346
        %369 = vmatprep.subr.mxu0 0.0
        %370 = vmatpush1.msra.mxu0 %v347
        %371 = vmatprep.subr.mxu0 0.0
        %372 = vmatpush1.msra.mxu0 %v348
        %373 = vmatprep.subr.mxu0 0.0
        %374 = vmatpush1.msra.mxu0 %v349
        %375 = vmatprep.subr.mxu0 0.0
        %376 = vmatpush1.msra.mxu0 %v350
        %377 = vmatprep.subr.mxu0 0.0
        %378 = vmatpush1.msra.mxu0 %v351
        %379 = vmatprep.subr.mxu0 0.0
        %380 = vmatpush1.msra.mxu0 %v352
        %381 = vmatprep.subr.mxu0 0.0
        %382 = vmatpush1.msra.mxu0 %v353
        %383 = vmatprep.subr.mxu0 0.0
        %384 = vmatpush1.msra.mxu0 %v354
        %385 = vmatprep.subr.mxu0 0.0
        %386 = vmatpush1.msra.mxu0 %v355
        %387 = vmatprep.subr.mxu0 0.0
        %388 = vmatpush1.msra.mxu0 %v356
        %389 = vmatprep.subr.mxu0 0.0
        %390 = vmatpush1.msra.mxu0 0.0
        %391 = vmatprep.subr.mxu0 0.0
        %392 = vmatpush1.msra.mxu0 0.0
        %393 = vmatprep.subr.mxu0 0.0
        %394 = vmatpush1.msra.mxu0 0.0
        %395 = vmatprep.subr.mxu0 0.0
        %396 = vmatpush1.msra.mxu0 0.0
        %397 = vmatprep.subr.mxu0 0.0
        %398 = vmatpush1.msra.mxu0 0.0
        %399 = vmatprep.subr.mxu0 0.0
        %400 = vmatpush1.msra.mxu0 0.0
        %401 = vmatprep.subr.mxu0 0.0
        %402 = vmatpush1.msra.mxu0 0.0
        %403 = vmatprep.subr.mxu0 0.0
        %404 = vmatpush1.msra.mxu0 0.0
        %405 = vmatprep.subr.mxu0 0.0
        %406 = vmatpush1.msra.mxu0 0.0
        %407 = vmatprep.subr.mxu0 0.0
        %408 = vmatpush1.msra.mxu0 0.0
        %409 = vmatprep.subr.mxu0 0.0
        %410 = vmatpush1.msra.mxu0 0.0
        %411 = vmatprep.subr.mxu0 0.0
        %412 = vmatpush1.msra.mxu0 0.0
        %413 = vmatprep.subr.mxu0 0.0
        %414 = vmatpush1.msra.mxu0 0.0
        %415 = vmatprep.subr.mxu0 0.0
        %416 = vmatpush1.msra.mxu0 0.0
        %417 = vmatprep.subr.mxu0 0.0
        %418 = vmatpush1.msra.mxu0 0.0
        %419 = vmatprep.subr.mxu0 0.0
        %420 = vmatpush1.msra.mxu0 0.0
        %421 = vmatprep.mubr.f32.mxu0 0.0
        %422 = vmatmul.mubr.f32.gmra.mrb[0].mxu0 %v339
        %v423 = vpop.f32.mrb[0].mxu0
        %v424 = vadd.f32 0.0, %v423
        %v425 = vpop.f32.mrb[0].mxu0
        %426 = vmatprep.mubr.f32.mxu0 0.0
        %427 = vmatmul.mubr.f32.gmra.mrb[0].mxu0 %v340
        %v428 = vpop.f32.mrb[0].mxu0
        %v429 = vadd.f32 0.0, %v428
        %v430 = vpop.f32.mrb[0].mxu0
        %431 = vdwg.mxu0
        %v432 = vld [vmem:[%s2] sm:$0x1]
        %v434 = vlaneseq
        %v435 = vshrl.u32 %v434, 7
        %v436 = vsub.s32 0, %v435
        %v437 = vrot.slane %v432, %v436
        %v439 = vmul.f32 %v424, %v437
        %v440 = vmul.f32 %v429, %v437
        %v441 = vld [vmem:[%s3] sm:$0x1]
        %v443 = vlaneseq
        %v444 = vshrl.u32 %v443, 7
        %v445 = vsub.s32 0, %v444
        %v446 = vrot.slane %v441, %v445
        %v448 = vadd.f32 %v439, %v446
        %v449 = vadd.f32 %v440, %v446
        %v450 = vxor.u32 %v448, 2147483648
        %v451 = vxor.u32 %v449, 2147483648
        %v452 = vmul.f32 %v450, 1.442695
        %v453 = vpow.pop %v452
        %v454 = vmul.f32 %v451, 1.442695
        %v455 = vpow.pop %v454
        %v456 = vadd.f32 %v453, 1.0
        %v457 = vadd.f32 %v455, 1.0
        %v458 = vrcp.pop %v456
        %v459 = vmul.f32 1.0, %v458
        %v460 = vrcp.pop %v457
        %v461 = vmul.f32 1.0, %v460
        %v462 = vmul.f32 %v448, %v459
        %v463 = vmul.f32 %v449, %v461
        %v464 = vld [vmem:[#allocation5] sm:$0xff]
        %v465 = vld [vmem:[#allocation5 + $0x8] sm:$0xff]
        %vm466 = vcmask 130048
        %v468 = vsel %vm466, %v464, 0
        %v471 = vsel %vm466, %v465, 0
        %473 = vmatprep.subr.mxu0 0.0
        %474 = vmatpush1.msra.mxu0 %v462
        %475 = vmatprep.subr.mxu0 0.0
        %476 = vmatpush1.msra.mxu0 %v463
        %477 = vmatprep.subr.mxu0 0.0
        %478 = vmatpush1.msra.mxu0 0.0
        %479 = vmatprep.subr.mxu0 0.0
        %480 = vmatpush1.msra.mxu0 0.0
        %481 = vmatprep.subr.mxu0 0.0
        %482 = vmatpush1.msra.mxu0 0.0
        %483 = vmatprep.subr.mxu0 0.0
        %484 = vmatpush1.msra.mxu0 0.0
        %485 = vmatprep.subr.mxu0 0.0
        %486 = vmatpush1.msra.mxu0 0.0
        %487 = vmatprep.subr.mxu0 0.0
        %488 = vmatpush1.msra.mxu0 0.0
        %489 = vmatprep.subr.mxu0 0.0
        %490 = vmatpush1.msra.mxu0 0.0
        %491 = vmatprep.subr.mxu0 0.0
        %492 = vmatpush1.msra.mxu0 0.0
        %493 = vmatprep.subr.mxu0 0.0
        %494 = vmatpush1.msra.mxu0 0.0
        %495 = vmatprep.subr.mxu0 0.0
        %496 = vmatpush1.msra.mxu0 0.0
        %497 = vmatprep.subr.mxu0 0.0
        %498 = vmatpush1.msra.mxu0 0.0
        %499 = vmatprep.subr.mxu0 0.0
        %500 = vmatpush1.msra.mxu0 0.0
        %501 = vmatprep.subr.mxu0 0.0
        %502 = vmatpush1.msra.mxu0 0.0
        %503 = vmatprep.subr.mxu0 0.0
        %504 = vmatpush1.msra.mxu0 0.0
        %505 = vmatprep.subr.mxu0 0.0
        %506 = vmatpush1.msra.mxu0 0.0
        %507 = vmatprep.subr.mxu0 0.0
        %508 = vmatpush1.msra.mxu0 0.0
        %509 = vmatprep.subr.mxu0 0.0
        %510 = vmatpush1.msra.mxu0 0.0
        %511 = vmatprep.subr.mxu0 0.0
        %512 = vmatpush1.msra.mxu0 0.0
        %513 = vmatprep.subr.mxu0 0.0
        %514 = vmatpush1.msra.mxu0 0.0
        %515 = vmatprep.subr.mxu0 0.0
        %516 = vmatpush1.msra.mxu0 0.0
        %517 = vmatprep.subr.mxu0 0.0
        %518 = vmatpush1.msra.mxu0 0.0
        %519 = vmatprep.subr.mxu0 0.0
        %520 = vmatpush1.msra.mxu0 0.0
        %521 = vmatprep.subr.mxu0 0.0
        %522 = vmatpush1.msra.mxu0 0.0
        %523 = vmatprep.subr.mxu0 0.0
        %524 = vmatpush1.msra.mxu0 0.0
        %525 = vmatprep.subr.mxu0 0.0
        %526 = vmatpush1.msra.mxu0 0.0
        %527 = vmatprep.subr.mxu0 0.0
        %528 = vmatpush1.msra.mxu0 0.0
        %529 = vmatprep.subr.mxu0 0.0
        %530 = vmatpush1.msra.mxu0 0.0
        %531 = vmatprep.subr.mxu0 0.0
        %532 = vmatpush1.msra.mxu0 0.0
        %533 = vmatprep.subr.mxu0 0.0
        %534 = vmatpush1.msra.mxu0 0.0
        %535 = vmatprep.subr.mxu0 0.0
        %536 = vmatpush1.msra.mxu0 0.0
        %537 = vmatprep.mubr.f32.mxu0 0.0
        %538 = vmatmul.mubr.f32.gmra.mrb[0].mxu0 %v468
        %v539 = vpop.f32.mrb[0].mxu0
        %v540 = vadd.f32 0.0, %v539
        %v541 = vpop.f32.mrb[0].mxu0
        %542 = vmatprep.mubr.f32.mxu0 0.0
        %543 = vmatmul.mubr.f32.gmra.mrb[0].mxu0 %v471
        %v544 = vpop.f32.mrb[0].mxu0
        %v545 = vadd.f32 0.0, %v544
        %v546 = vpop.f32.mrb[0].mxu0
        %547 = vdwg.mxu0
        %s548 = scalar_lea.vmem [#allocation5], 16
        %v549 = vld [vmem:[%s548] sm:$0xff]
        %v550 = vld [vmem:[%s548 + $0x8] sm:$0xff]
        %v552 = vsel %vm466, %v549, 0
        %v555 = vsel %vm466, %v550, 0
        %557 = vmatprep.subr.mxu0 0.0
        %558 = vmatpush1.msra.mxu0 %v462
        %559 = vmatprep.subr.mxu0 0.0
        %560 = vmatpush1.msra.mxu0 %v463
        %561 = vmatprep.subr.mxu0 0.0
        %562 = vmatpush1.msra.mxu0 0.0
        %563 = vmatprep.subr.mxu0 0.0
        %564 = vmatpush1.msra.mxu0 0.0
        %565 = vmatprep.subr.mxu0 0.0
        %566 = vmatpush1.msra.mxu0 0.0
        %567 = vmatprep.subr.mxu0 0.0
        %568 = vmatpush1.msra.mxu0 0.0
        %569 = vmatprep.subr.mxu0 0.0
        %570 = vmatpush1.msra.mxu0 0.0
        %571 = vmatprep.subr.mxu0 0.0
        %572 = vmatpush1.msra.mxu0 0.0
        %573 = vmatprep.subr.mxu0 0.0
        %574 = vmatpush1.msra.mxu0 0.0
        %575 = vmatprep.subr.mxu0 0.0
        %576 = vmatpush1.msra.mxu0 0.0
        %577 = vmatprep.subr.mxu0 0.0
        %578 = vmatpush1.msra.mxu0 0.0
        %579 = vmatprep.subr.mxu0 0.0
        %580 = vmatpush1.msra.mxu0 0.0
        %581 = vmatprep.subr.mxu0 0.0
        %582 = vmatpush1.msra.mxu0 0.0
        %583 = vmatprep.subr.mxu0 0.0
        %584 = vmatpush1.msra.mxu0 0.0
        %585 = vmatprep.subr.mxu0 0.0
        %586 = vmatpush1.msra.mxu0 0.0
        %587 = vmatprep.subr.mxu0 0.0
        %588 = vmatpush1.msra.mxu0 0.0
        %589 = vmatprep.subr.mxu0 0.0
        %590 = vmatpush1.msra.mxu0 0.0
        %591 = vmatprep.subr.mxu0 0.0
        %592 = vmatpush1.msra.mxu0 0.0
        %593 = vmatprep.subr.mxu0 0.0
        %594 = vmatpush1.msra.mxu0 0.0
        %595 = vmatprep.subr.mxu0 0.0
        %596 = vmatpush1.msra.mxu0 0.0
        %597 = vmatprep.subr.mxu0 0.0
        %598 = vmatpush1.msra.mxu0 0.0
        %599 = vmatprep.subr.mxu0 0.0
        %600 = vmatpush1.msra.mxu0 0.0
        %601 = vmatprep.subr.mxu0 0.0
        %602 = vmatpush1.msra.mxu0 0.0
        %603 = vmatprep.subr.mxu0 0.0
        %604 = vmatpush1.msra.mxu0 0.0
        %605 = vmatprep.subr.mxu0 0.0
        %606 = vmatpush1.msra.mxu0 0.0
        %607 = vmatprep.subr.mxu0 0.0
        %608 = vmatpush1.msra.mxu0 0.0
        %609 = vmatprep.subr.mxu0 0.0
        %610 = vmatpush1.msra.mxu0 0.0
        %611 = vmatprep.subr.mxu0 0.0
        %612 = vmatpush1.msra.mxu0 0.0
        %613 = vmatprep.subr.mxu0 0.0
        %614 = vmatpush1.msra.mxu0 0.0
        %615 = vmatprep.subr.mxu0 0.0
        %616 = vmatpush1.msra.mxu0 0.0
        %617 = vmatprep.subr.mxu0 0.0
        %618 = vmatpush1.msra.mxu0 0.0
        %619 = vmatprep.subr.mxu0 0.0
        %620 = vmatpush1.msra.mxu0 0.0
        %621 = vmatprep.mubr.f32.mxu0 0.0
        %622 = vmatmul.mubr.f32.gmra.mrb[0].mxu0 %v552
        %v623 = vpop.f32.mrb[0].mxu0
        %v624 = vadd.f32 0.0, %v623
        %v625 = vpop.f32.mrb[0].mxu0
        %626 = vmatprep.mubr.f32.mxu0 0.0
        %627 = vmatmul.mubr.f32.gmra.mrb[0].mxu0 %v555
        %v628 = vpop.f32.mrb[0].mxu0
        %v629 = vadd.f32 0.0, %v628
        %v630 = vpop.f32.mrb[0].mxu0
        %631 = vdwg.mxu0
        %634 = vrot.lane.b32.xlu0 %v462, 64
        %v635 = vpop.permute.xlu0 %634
        %636 = vrot.lane.b32.xlu0 %v463, 64
        %v637 = vpop.permute.xlu0 %636
        %vm640 = vcmask 523264
        %v641 = vsel %vm640, %v540, %v635
        %v642 = vsel %vm640, %v545, %v637
        %v643 = vld [vmem:[%s5] sm:$0xff]
        %v644 = vld [vmem:[%s5 + $0x8] sm:$0xff]
        %v645 = vld [vmem:[%s5 + $0x10] sm:$0xff]
        %v646 = vld [vmem:[%s5 + $0x18] sm:$0xff]
        %v647 = vld [vmem:[%s5 + $0x20] sm:$0xff]
        %v648 = vld [vmem:[%s5 + $0x28] sm:$0xff]
        %v649 = vld [vmem:[%s5 + $0x30] sm:$0xff]
        %v650 = vld [vmem:[%s5 + $0x38] sm:$0xff]
        %v651 = vld [vmem:[%s5 + $0x40] sm:$0xff]
        %v652 = vld [vmem:[%s5 + $0x48] sm:$0xff]
        %v653 = vld [vmem:[%s5 + $0x50] sm:$0xff]
        %v654 = vld [vmem:[%s5 + $0x58] sm:$0xff]
        %v655 = vld [vmem:[%s5 + $0x60] sm:$0xff]
        %v656 = vld [vmem:[%s5 + $0x68] sm:$0xff]
        %v657 = vld [vmem:[%s5 + $0x70] sm:$0xff]
        %v658 = vld [vmem:[%s5 + $0x78] sm:$0xff]
        %v659 = vld [vmem:[%s5 + $0x80] sm:$0xff]
        %v660 = vld [vmem:[%s5 + $0x88] sm:$0xff]
        %v661 = vld [vmem:[%s5 + $0x90] sm:$0xff]
        %v662 = vld [vmem:[%s5 + $0x98] sm:$0xff]
        %v663 = vld [vmem:[%s5 + $0xa0] sm:$0xff]
        %v664 = vld [vmem:[%s5 + $0xa8] sm:$0xff]
        %v665 = vld [vmem:[%s5 + $0xb0] sm:$0xff]
        %v666 = vld [vmem:[%s5 + $0xb8] sm:$0xff]
        %v668 = vsel %vm640, %v624, 0
        %v671 = vsel %vm640, %v629, 0
        %673 = vmatprep.subr.mxu0 0.0
        %674 = vmatpush1.msra.mxu0 %v643
        %675 = vmatprep.subr.mxu0 0.0
        %676 = vmatpush1.msra.mxu0 %v644
        %677 = vmatprep.subr.mxu0 0.0
        %678 = vmatpush1.msra.mxu0 %v645
        %679 = vmatprep.subr.mxu0 0.0
        %680 = vmatpush1.msra.mxu0 %v646
        %681 = vmatprep.subr.mxu0 0.0
        %682 = vmatpush1.msra.mxu0 %v647
        %683 = vmatprep.subr.mxu0 0.0
        %684 = vmatpush1.msra.mxu0 %v648
        %685 = vmatprep.subr.mxu0 0.0
        %686 = vmatpush1.msra.mxu0 %v649
        %687 = vmatprep.subr.mxu0 0.0
        %688 = vmatpush1.msra.mxu0 %v650
        %689 = vmatprep.subr.mxu0 0.0
        %690 = vmatpush1.msra.mxu0 %v651
        %691 = vmatprep.subr.mxu0 0.0
        %692 = vmatpush1.msra.mxu0 %v652
        %693 = vmatprep.subr.mxu0 0.0
        %694 = vmatpush1.msra.mxu0 %v653
        %695 = vmatprep.subr.mxu0 0.0
        %696 = vmatpush1.msra.mxu0 %v654
        %697 = vmatprep.subr.mxu0 0.0
        %698 = vmatpush1.msra.mxu0 %v655
        %699 = vmatprep.subr.mxu0 0.0
        %700 = vmatpush1.msra.mxu0 %v656
        %701 = vmatprep.subr.mxu0 0.0
        %702 = vmatpush1.msra.mxu0 %v657
        %703 = vmatprep.subr.mxu0 0.0
        %704 = vmatpush1.msra.mxu0 %v658
        %705 = vmatprep.subr.mxu0 0.0
        %706 = vmatpush1.msra.mxu0 %v659
        %707 = vmatprep.subr.mxu0 0.0
        %708 = vmatpush1.msra.mxu0 %v660
        %709 = vmatprep.subr.mxu0 0.0
        %710 = vmatpush1.msra.mxu0 %v661
        %711 = vmatprep.subr.mxu0 0.0
        %712 = vmatpush1.msra.mxu0 %v662
        %713 = vmatprep.subr.mxu0 0.0
        %714 = vmatpush1.msra.mxu0 %v663
        %715 = vmatprep.subr.mxu0 0.0
        %716 = vmatpush1.msra.mxu0 %v664
        %717 = vmatprep.subr.mxu0 0.0
        %718 = vmatpush1.msra.mxu0 %v665
        %719 = vmatprep.subr.mxu0 0.0
        %720 = vmatpush1.msra.mxu0 %v666
        %721 = vmatprep.subr.mxu0 0.0
        %722 = vmatpush1.msra.mxu0 0.0
        %723 = vmatprep.subr.mxu0 0.0
        %724 = vmatpush1.msra.mxu0 0.0
        %725 = vmatprep.subr.mxu0 0.0
        %726 = vmatpush1.msra.mxu0 0.0
        %727 = vmatprep.subr.mxu0 0.0
        %728 = vmatpush1.msra.mxu0 0.0
        %729 = vmatprep.subr.mxu0 0.0
        %730 = vmatpush1.msra.mxu0 0.0
        %731 = vmatprep.subr.mxu0 0.0
        %732 = vmatpush1.msra.mxu0 0.0
        %733 = vmatprep.subr.mxu0 0.0
        %734 = vmatpush1.msra.mxu0 0.0
        %735 = vmatprep.subr.mxu0 0.0
        %736 = vmatpush1.msra.mxu0 0.0
        %737 = vmatprep.mubr.f32.mxu0 %v668
        %738 = vmatmul.mubr.f32.gmra.mrb[0].mxu0 %v641
        %v739 = vpop.f32.mrb[0].mxu0
        %v740 = vadd.f32 0.0, %v739
        %v741 = vpop.f32.mrb[0].mxu0
        %742 = vmatprep.mubr.f32.mxu0 %v671
        %743 = vmatmul.mubr.f32.gmra.mrb[0].mxu0 %v642
        %v744 = vpop.f32.mrb[0].mxu0
        %v745 = vadd.f32 0.0, %v744
        %v746 = vpop.f32.mrb[0].mxu0
        %747 = vdwg.mxu0
        %v748 = vld [vmem:[%s6] sm:$0x1]
        %v750 = vlaneseq
        %v751 = vshrl.u32 %v750, 7
        %v752 = vsub.s32 0, %v751
        %v753 = vrot.slane %v748, %v752
        %v755 = vmul.f32 %v740, %v753
        %v756 = vmul.f32 %v745, %v753
        %v757 = vld [vmem:[%s7] sm:$0x1]
        %v759 = vlaneseq
        %v760 = vshrl.u32 %v759, 7
        %v761 = vsub.s32 0, %v760
        %v762 = vrot.slane %v757, %v761
        %v764 = vadd.f32 %v755, %v762
        %v765 = vadd.f32 %v756, %v762
        %v766 = vxor.u32 %v764, 2147483648
        %v767 = vxor.u32 %v765, 2147483648
        %v768 = vmul.f32 %v766, 1.442695
        %v769 = vpow.pop %v768
        %v770 = vmul.f32 %v767, 1.442695
        %v771 = vpow.pop %v770
        %v772 = vadd.f32 %v769, 1.0
        %v773 = vadd.f32 %v771, 1.0
        %v774 = vrcp.pop %v772
        %v775 = vmul.f32 1.0, %v774
        %v776 = vrcp.pop %v773
        %v777 = vmul.f32 1.0, %v776
        %v778 = vmul.f32 %v764, %v775
        %v779 = vmul.f32 %v765, %v777
        %v780 = vadd.f32 %v778, %v339
        %v781 = vadd.f32 %v779, %v340
        %782 = vst [vmem:[%s338] sm:$0xff] %v780
        %783 = vst [vmem:[%s338 + $0x8] sm:$0xff] %v781
        %s784 = sand.u32 %s207, 1
        %s785 = scalar_lea.sflag [#allocation4], %s784
        %s786 = sand.u32 %s207, 1
        %s787 = smul.addr %s786, 16
        %s788 = scalar_lea.vmem [#allocation7], %s787
        // Predicated region
        $region61: #{bottleneck_pallas.1} parent=51 // pred_check
          %p789 = pneg %p217
        $region62: #{bottleneck_pallas.1} parent=51 // pred_check_branch
          %791 = sbr.rel (%p789) target = $region64
        $region63: #{bottleneck_pallas.1} parent=51 // pred_region
          %s793 = ssub.s32 256, 256
          %794 = vsyncadd %s785, %s793
          %s795 = smul.addr %s26, 2
          %s796 = smul.addr %s795, 128
          %s797 = scalar_lea.hbm %s8, %s796
          %s798 = sshll.u32 %s788, 4
          %s799 = int_to_ptr.vmem [resolvable:$true] %s798
          %804 = dma.vmem_to_hbm [thread:$0]  %s799, 256, %s797, %s785, 128, 128, 8
        $region64: #{bottleneck_pallas.1} parent=51 // pred_fallthru
          _
      $region52: #{bottleneck_pallas.1} parent=5 // pred_fallthru
        _
      %p805 = scmp.le.s32.totalorder 2, %s21
      // Predicated region
      $region65: #{bottleneck_pallas.1} parent=5 // pred_check
        %p806 = pneg %p805
      $region66: #{bottleneck_pallas.1} parent=5 // pred_check_branch
        %808 = sbr.rel (%p806) target = $region68
      $region67: #{bottleneck_pallas.1} parent=5 // pred_region
        %s809 = ssub.s32 %s21, 2
        // Predicated region
        $region69: #{bottleneck_pallas.1} parent=67 // pred_check
          %p810 = pneg %p223
        $region70: #{bottleneck_pallas.1} parent=67 // pred_check_branch
          %812 = sbr.rel (%p810) target = $region72
        $region71: #{bottleneck_pallas.1} parent=67 // pred_region
          %s813 = sand.u32 %s208, 1
          %s814 = scalar_lea.sflag [#allocation4], %s813
          %s815 = sand.u32 %s208, 1
          %s816 = smul.addr %s815, 16
          %s817 = scalar_lea.vmem [#allocation7], %s816
          %818 = dma.done %s814, 256
        $region72: #{bottleneck_pallas.1} parent=67 // pred_fallthru
          _
      $region68: #{bottleneck_pallas.1} parent=5 // pred_fallthru
        _
    $region6: #{bottleneck_pallas.1} parent=1 // loop_footer
      %s25 = sadd.s32 1, %s21
    $region7: #{bottleneck_pallas.1} parent=1 // loop_footer_branch
      %20 = sbr.rel target = $region3
    $region8: #{bottleneck_pallas.1} parent=1 // loop_exit
      _
    %819 = vsyncpa [#allocation3], 1
    %s820 = scalar_lea.sflag [#allocation3], 1
    %821 = vsyncpa %s820, 1
    %822 = vsyncpa [#allocation6], 1
    %823 = vsyncpa [#allocation4], 1
    %s824 = scalar_lea.sflag [#allocation4], 1
    %825 = vsyncpa %s824, 1

</llo_original>
